<compile_context>
chip_gen: v6e
topology: v6e:2x2x1
jax: 0.10.0
libtpu: 0.0.40
codegen_flags: <defaults>
</compile_context>

<pallas_src>
import math

import jax
import jax.numpy as jnp
from jax.experimental import pallas as pl
from jax.experimental.pallas import tpu as pltpu


# ----------------------------- small helpers --------------------------------

def _round_up(v, m):
    return (v + m - 1) // m * m


def _pad_axis(a, axis, target):
    pad = target - a.shape[axis]
    if pad == 0:
        return a
    widths = [(0, 0)] * a.ndim
    widths[axis] = (0, pad)
    return jnp.pad(a, widths)


def _device_vmem_and_cores():
    """Best-effort physical per-core VMEM bytes and TensorCores-per-chip."""
    vmem_bytes = 64 << 20          # conservative default: v7x per-TC VMEM
    num_tc = 1
    try:
        info = pltpu.get_tpu_info()
        vmem_bytes = int(getattr(info, "vmem_capacity_bytes", vmem_bytes))
    except Exception:
        pass
    try:
        kind = jax.devices()[0].device_kind.lower()
        if "v7" in kind:           # v7x: 2 TensorCores per chip
            num_tc = 2
    except Exception:
        pass
    return vmem_bytes, num_tc


def _vmem_estimate(tile_m, tile_k, d_model_p, x_itemsize, out_itemsize,
                   multi_k, cast_x):
    """Working-set estimate including kernel-internal temporaries."""
    est = 2 * 2 * d_model_p * tile_k * 2            # W1+W2 K-blocks, 2x buffered, bf16
    est += 2 * tile_m * d_model_p * x_itemsize      # x tiles (double-buffered)
    est += 2 * tile_m * d_model_p * out_itemsize    # out tiles (double-buffered)
    est += 2 * 2 * (tile_k + d_model_p) * 4         # bias blocks
    if multi_k:
        est += tile_m * d_model_p * 4               # f32 accumulator scratch
        if cast_x:
            est += tile_m * d_model_p * 2           # bf16 x scratch
    # kernel-internal temporaries: f32 h (+GELU temps ~3x) and bf16 copy of h
    est += tile_m * tile_k * (3 * 4 + 2)
    if cast_x and not multi_k:
        est += tile_m * d_model_p * 2               # bf16 cast of x (single-K path)
    return est


# ----------------------------- kernel bodies --------------------------------

def _make_residual_ffn_kernel(multi_k, cast_x, approximate_gelu):
    inv_sqrt2 = 1.0 / math.sqrt(2.0)

    def gelu(h):
        if approximate_gelu:
            # TODO(synk): tanh approximation deviates slightly from torch's exact GELU.
            return jax.nn.gelu(h, approximate=True)
        return 0.5 * h * (1.0 + jax.lax.erf(h * inv_sqrt2))

    def ffn_block(xb, w1, b1, w2):
        # bf16 x bf16 -> f32 accumulate on the MXU; GELU in f32; 2nd matmul in bf16.
        h = jnp.dot(xb, w1, preferred_element_type=jnp.float32) + b1
        h = gelu(h)
        return jnp.dot(h.astype(jnp.bfloat16), w2, preferred_element_type=jnp.float32)

    if not multi_k:
        # Single-K fast path: whole d_ff in one block -> no accumulator round trips.
        def kernel(x_ref, w1_ref, b1_ref, w2_ref, b2_ref, o_ref):
            x = x_ref[...]
            xb = x.astype(jnp.bfloat16) if cast_x else x
            y = ffn_block(xb, w1_ref[...], b1_ref[...], w2_ref[...])
            o_ref[...] = (y + b2_ref[...] + x.astype(jnp.float32)).astype(o_ref.dtype)
        return kernel

    if cast_x:
        def kernel(x_ref, w1_ref, b1_ref, w2_ref, b2_ref, o_ref, acc_ref, xb_ref):
            k = pl.program_id(1)

            @pl.when(k == 0)
            def _():
                acc_ref[...] = jnp.zeros_like(acc_ref)
                xb_ref[...] = x_ref[...].astype(jnp.bfloat16)  # cast once per row tile

            acc_ref[...] += ffn_block(xb_ref[...], w1_ref[...], b1_ref[...], w2_ref[...])

            @pl.when(k == pl.num_programs(1) - 1)
            def _():
                y = acc_ref[...] + b2_ref[...] + x_ref[...].astype(jnp.float32)
                o_ref[...] = y.astype(o_ref.dtype)
        return kernel

    def kernel(x_ref, w1_ref, b1_ref, w2_ref, b2_ref, o_ref, acc_ref):
        k = pl.program_id(1)

        @pl.when(k == 0)
        def _():
            acc_ref[...] = jnp.zeros_like(acc_ref)

        acc_ref[...] += ffn_block(x_ref[...], w1_ref[...], b1_ref[...], w2_ref[...])

        @pl.when(k == pl.num_programs(1) - 1)
        def _():
            y = acc_ref[...] + b2_ref[...] + x_ref[...].astype(jnp.float32)
            o_ref[...] = y.astype(o_ref.dtype)
    return kernel


# ----------------------------- wrapper API -----------------------------------

def prepare_residual_ffn_params(w1, b1, w2, b2):
    """One-time (model-load) weight prep: lane-dense zero padding + bf16 cast and
    device-aware K tiling. Call once, reuse the result every forward pass."""
    d_model, d_ff = w1.shape
    assert w2.shape == (d_ff, d_model)

    d_model_p = _round_up(d_model, 128)
    d_ff_p = _round_up(d_ff, 128)

    vmem_bytes, num_tc = _device_vmem_and_cores()

    # Double-buffered W1+W2 K-blocks cost 8 * d_model_p * tile_k bytes (bf16).
    # Keep them under ~1/3 of physical VMEM so big x/out/acc/h row tiles still fit.
    budget = vmem_bytes // 3
    tile_k = budget // (8 * d_model_p)
    tile_k = min(max((tile_k // 256) * 256, 256), 2048)
    if d_ff_p <= tile_k:
        tile_k = d_ff_p                        # single K step (fast path)
    else:
        d_ff_p = _round_up(d_ff_p, tile_k)     # pad so tile_k divides d_ff_p

    w1_p = _pad_axis(_pad_axis(w1, 0, d_model_p), 1, d_ff_p).astype(jnp.bfloat16)
    w2_p = _pad_axis(_pad_axis(w2, 0, d_ff_p), 1, d_model_p).astype(jnp.bfloat16)
    b1_p = _pad_axis(b1.reshape(1, d_ff), 1, d_ff_p).astype(jnp.float32)
    b2_p = _pad_axis(b2.reshape(1, d_model), 1, d_model_p).astype(jnp.float32)

    return {
        "w1": w1_p, "b1": b1_p, "w2": w2_p, "b2": b2_p,
        "d_model": d_model, "d_ff": d_ff,
        "d_model_p": d_model_p, "d_ff_p": d_ff_p,
        "tile_k": tile_k,
        "vmem_bytes": vmem_bytes, "num_tc": num_tc,
    }


def residual_feed_forward(x, params, *, tile_m=None, approximate_gelu=False):
    """Residual(FeedForward): returns x + FFN(x).  x: (..., d_model)."""
    d_model = params["d_model"]
    d_model_p = params["d_model_p"]
    d_ff_p = params["d_ff_p"]
    tile_k = params["tile_k"]
    vmem_bytes = params["vmem_bytes"]
    num_tc = params["num_tc"]

    orig_shape = x.shape
    assert orig_shape[-1] == d_model
    M = 1
    for s in orig_shape[:-1]:
        M *= s

    cast_x = x.dtype != jnp.bfloat16
    x_itemsize = jnp.dtype(x.dtype).itemsize
    multi_k = d_ff_p > tile_k
    nk = d_ff_p // tile_k

    # Row tiling: big default for arithmetic intensity (weights are re-streamed once
    # per row tile), shrunk if the working set would not fit this device's VMEM.
    if tile_m is None:
        tile_m = 1024 if (not cast_x and vmem_bytes >= (96 << 20)) else 512
    vmem_budget = max(vmem_bytes - (8 << 20), 16 << 20)
    while tile_m > 128 and _vmem_estimate(tile_m, tile_k, d_model_p, x_itemsize,
                                          x_itemsize, multi_k, cast_x) > vmem_budget:
        tile_m //= 2

    # Clamp for small M (pad rather than assert); on v7x make sure the "parallel"
    # row axis has at least num_tc tiles so both TensorCores get work.
    tile_m_eff = min(tile_m, _round_up(M, 16))
    if num_tc >= 2 and M > 16:
        tile_m_eff = min(tile_m_eff, max(16, _round_up(-(-M // num_tc), 16)))
    M_p = _round_up(M, tile_m_eff)
    nm = M_p // tile_m_eff

    # Per-call work touches only x (weights were prepared once at load time).
    x2d = _pad_axis(_pad_axis(x.reshape(M, d_model), 1, d_model_p), 0, M_p)
    w1_p, b1_p, w2_p, b2_p = params["w1"], params["b1"], params["w2"], params["b2"]

    # Advisory cost estimate: weights are re-streamed once per row tile.
    weight_bytes = w1_p.size * 2 + w2_p.size * 2 + b1_p.size * 4 + b2_p.size * 4
    cost = pl.CostEstimate(
        flops=4 * M_p * d_model_p * d_ff_p,          # two matmuls
        transcendentals=M_p * d_ff_p,                # erf / tanh
        bytes_accessed=int(2 * M_p * d_model_p * x_itemsize + nm * weight_bytes),
    )

    # Scoped-VMEM limit: always set from the estimate (v5e default is only 16 MiB),
    # capped at physical VMEM minus headroom (v7x has only 64 MiB).
    vmem_est = _vmem_estimate(tile_m_eff, tile_k, d_model_p, x_itemsize,
                              x_itemsize, multi_k, cast_x)
    vmem_limit = int(vmem_est * 3 // 2) + (4 << 20)
    vmem_limit = max(vmem_limit, min(32 << 20, vmem_bytes - (8 << 20)))
    vmem_limit = min(vmem_limit, vmem_bytes - (8 << 20))

    kernel = _make_residual_ffn_kernel(multi_k, cast_x, approximate_gelu)

    if multi_k:
        grid = (nm, nk)
        in_specs = [
            pl.BlockSpec((tile_m_eff, d_model_p), lambda i, k: (i, 0)),  # x row tile
            pl.BlockSpec((d_model_p, tile_k), lambda i, k: (0, k)),      # W1 K-block
            pl.BlockSpec((1, tile_k), lambda i, k: (0, k)),              # b1 K-block
            pl.BlockSpec((tile_k, d_model_p), lambda i, k: (k, 0)),      # W2 K-block
            pl.BlockSpec((1, d_model_p), lambda i, k: (0, 0)),           # b2
        ]
        out_specs = pl.BlockSpec((tile_m_eff, d_model_p), lambda i, k: (i, 0))
        scratch_shapes = [pltpu.VMEM((tile_m_eff, d_model_p), jnp.float32)]
        if cast_x:
            scratch_shapes.append(pltpu.VMEM((tile_m_eff, d_model_p), jnp.bfloat16))
        dim_sem = ("parallel", "arbitrary")
    else:
        grid = (nm,)
        in_specs = [
            pl.BlockSpec((tile_m_eff, d_model_p), lambda i: (i, 0)),
            pl.BlockSpec((d_model_p, d_ff_p), lambda i: (0, 0)),
            pl.BlockSpec((1, d_ff_p), lambda i: (0, 0)),
            pl.BlockSpec((d_ff_p, d_model_p), lambda i: (0, 0)),
            pl.BlockSpec((1, d_model_p), lambda i: (0, 0)),
        ]
        out_specs = pl.BlockSpec((tile_m_eff, d_model_p), lambda i: (i, 0))
        scratch_shapes = []
        dim_sem = ("parallel",)

    out2d = pl.pallas_call(
        kernel,
        out_shape=jax.ShapeDtypeStruct((M_p, d_model_p), x.dtype),
        grid_spec=pltpu.PrefetchScalarGridSpec(
            num_scalar_prefetch=0,
            grid=grid,
            in_specs=in_specs,
            out_specs=out_specs,
            scratch_shapes=scratch_shapes,
        ),
        compiler_params=pltpu.CompilerParams(
            dimension_semantics=dim_sem,
            vmem_limit_bytes=int(vmem_limit),
        ),
        cost_estimate=cost,
    )(x2d, w1_p, b1_p, w2_p, b2_p)

    return out2d[:M, :d_model].reshape(orig_shape)


# ----------------------------- demo / self-test ------------------------------

def _xavier_uniform(key, fan_in, fan_out, dtype=jnp.float32):
    limit = math.sqrt(6.0 / (fan_in + fan_out))
    return jax.random.uniform(key, (fan_in, fan_out), dtype, -limit, limit)


def _linear_bias(key, fan_in, size, dtype=jnp.float32):
    bound = 1.0 / math.sqrt(fan_in)
    return jax.random.uniform(key, (size,), dtype, -bound, bound)


if __name__ == "__main__":
    # Residual wrapping the transformer FeedForward; dropout is identity at inference.
    B, S, d_model = 2, 8, 128          # lane-dense small demo shape
    d_ff = 4 * d_model

    key = jax.random.PRNGKey(0)
    kx, kw1, kb1, kw2, kb2 = jax.random.split(key, 5)

    x = jax.random.normal(kx, (B, S, d_model), jnp.float32)
    w1 = _xavier_uniform(kw1, d_model, d_ff)     # stored (in_features, out_features)
    b1 = _linear_bias(kb1, d_model, d_ff)
    w2 = _xavier_uniform(kw2, d_ff, d_model)
    b2 = _linear_bias(kb2, d_ff, d_model)

    # Weight pad + bf16 cast hoisted: done ONCE here, not per forward call.
    params = prepare_residual_ffn_params(w1, b1, w2, b2)

    out = jax.block_until_ready(residual_feed_forward(x, params))

    # Plain-JAX reference mimicking the kernel's precision (bf16 MXU operands, f32 acc).
    xf = x.reshape(-1, d_model)
    xb = xf.astype(jnp.bfloat16).astype(jnp.float32)
    w1b = w1.astype(jnp.bfloat16).astype(jnp.float32)
    w2b = w2.astype(jnp.bfloat16).astype(jnp.float32)
    h = xb @ w1b + b1
    h = 0.5 * h * (1.0 + jax.lax.erf(h / math.sqrt(2.0)))
    hb = h.astype(jnp.bfloat16).astype(jnp.float32)
    ref = (xf + (hb @ w2b + b2)).reshape(B, S, d_model)

    assert out.shape == (B, S, d_model)
    assert jnp.allclose(out, ref, atol=2e-3, rtol=2e-3), "mismatch vs reference"

    print("KERNEL_OK")
</pallas_src>

<mosaic_0001>
module attributes {stable_mosaic.version = 11 : i64} {
  func.func @kernel(%arg0: i32, %arg1: memref<16x128xf32, #tpu.memory_space<vmem>>, %arg2: memref<128x512xbf16, #tpu.memory_space<vmem>>, %arg3: memref<1x512xf32, #tpu.memory_space<vmem>>, %arg4: memref<512x128xbf16, #tpu.memory_space<vmem>>, %arg5: memref<1x128xf32, #tpu.memory_space<vmem>>, %arg6: memref<16x128xf32, #tpu.memory_space<vmem>>) attributes {dimension_semantics = [#tpu.dimension_semantics<parallel>], iteration_bounds = array<i64: 1>, scalar_prefetch = 0 : i64, scratch_operands = 0 : i64, tpu.core_type = #tpu.core_type<tc>, window_params = [{transform_indices = @transform_0, window_bounds = array<i64: 16, 128>}, {pipeline_mode = #tpu.pipeline_mode<synchronous>, transform_indices = @transform_1, window_bounds = array<i64: 128, 512>}, {pipeline_mode = #tpu.pipeline_mode<synchronous>, transform_indices = @transform_2, window_bounds = array<i64: 1, 512>}, {pipeline_mode = #tpu.pipeline_mode<synchronous>, transform_indices = @transform_3, window_bounds = array<i64: 512, 128>}, {pipeline_mode = #tpu.pipeline_mode<synchronous>, transform_indices = @transform_4, window_bounds = array<i64: 1, 128>}, {transform_indices = @transform_5, window_bounds = array<i64: 16, 128>}]} {
    %c0 = arith.constant 0 : index
    %c0_0 = arith.constant 0 : index
    %0 = vector.load %arg1[%c0, %c0_0] : memref<16x128xf32, #tpu.memory_space<vmem>>, vector<16x128xf32>
    %1 = arith.truncf %0 : vector<16x128xf32> to vector<16x128xbf16>
    %c0_1 = arith.constant 0 : index
    %c0_2 = arith.constant 0 : index
    %2 = vector.load %arg2[%c0_1, %c0_2] : memref<128x512xbf16, #tpu.memory_space<vmem>>, vector<128x512xbf16>
    %c0_3 = arith.constant 0 : index
    %c0_4 = arith.constant 0 : index
    %3 = vector.load %arg3[%c0_3, %c0_4] : memref<1x512xf32, #tpu.memory_space<vmem>>, vector<1x512xf32>
    %c0_5 = arith.constant 0 : index
    %c0_6 = arith.constant 0 : index
    %4 = vector.load %arg4[%c0_5, %c0_6] : memref<512x128xbf16, #tpu.memory_space<vmem>>, vector<512x128xbf16>
    %cst = arith.constant dense<0.000000e+00> : vector<16x512xf32>
    %5 = tpu.matmul %1, %2, %cst {dimension_numbers = #tpu.dot_dimension_numbers<[1], [0], [0], [1], [0, 0, 1, 1], [], []>} : vector<16x128xbf16>, vector<128x512xbf16>, vector<16x512xf32> -> vector<16x512xf32>
    %6 = vector.broadcast %3 : vector<1x512xf32> to vector<16x512xf32>
    %7 = arith.addf %5, %6 : vector<16x512xf32>
    %cst_7 = arith.constant 5.000000e-01 : f32
    %8 = vector.broadcast %cst_7 : f32 to vector<16x512xf32>
    %9 = arith.mulf %8, %7 : vector<16x512xf32>
    %cst_8 = arith.constant 0.707106769 : f32
    %10 = vector.broadcast %cst_8 : f32 to vector<16x512xf32>
    %11 = arith.mulf %7, %10 : vector<16x512xf32>
    %12 = math.erf %11 : vector<16x512xf32>
    %cst_9 = arith.constant 1.000000e+00 : f32
    %13 = vector.broadcast %cst_9 : f32 to vector<16x512xf32>
    %14 = arith.addf %13, %12 : vector<16x512xf32>
    %15 = arith.mulf %9, %14 : vector<16x512xf32>
    %16 = arith.truncf %15 : vector<16x512xf32> to vector<16x512xbf16>
    %cst_10 = arith.constant dense<0.000000e+00> : vector<16x128xf32>
    %17 = tpu.matmul %16, %4, %cst_10 {dimension_numbers = #tpu.dot_dimension_numbers<[1], [0], [0], [1], [0, 0, 1, 1], [], []>} : vector<16x512xbf16>, vector<512x128xbf16>, vector<16x128xf32> -> vector<16x128xf32>
    %c0_11 = arith.constant 0 : index
    %c0_12 = arith.constant 0 : index
    %18 = vector.load %arg5[%c0_11, %c0_12] : memref<1x128xf32, #tpu.memory_space<vmem>>, vector<1x128xf32>
    %19 = vector.broadcast %18 : vector<1x128xf32> to vector<16x128xf32>
    %20 = arith.addf %17, %19 : vector<16x128xf32>
    %21 = arith.addf %20, %0 : vector<16x128xf32>
    %c0_13 = arith.constant 0 : index
    %c0_14 = arith.constant 0 : index
    %22 = vector.load %arg6[%c0_13, %c0_14] : memref<16x128xf32, #tpu.memory_space<vmem>>, vector<16x128xf32>
    tpu.vector_store %arg6[%c0_13, %c0_14], %21 {strides = array<i32>} : memref<16x128xf32, #tpu.memory_space<vmem>>, vector<16x128xf32>,
    return
  }
  func.func @transform_0(%arg0: i32) -> (i32, i32) {
    %c0_i32 = arith.constant 0 : i32
    %c0_i32_0 = arith.constant 0 : i32
    return %arg0, %c0_i32 : i32, i32
  }
  func.func @transform_1(%arg0: i32) -> (i32, i32) {
    %c0_i32 = arith.constant 0 : i32
    %c0_i32_0 = arith.constant 0 : i32
    %c0_i32_1 = arith.constant 0 : i32
    return %c0_i32, %c0_i32_0 : i32, i32
  }
  func.func @transform_2(%arg0: i32) -> (i32, i32) {
    %c0_i32 = arith.constant 0 : i32
    %c0_i32_0 = arith.constant 0 : i32
    %c0_i32_1 = arith.constant 0 : i32
    return %c0_i32, %c0_i32_0 : i32, i32
  }
  func.func @transform_3(%arg0: i32) -> (i32, i32) {
    %c0_i32 = arith.constant 0 : i32
    %c0_i32_0 = arith.constant 0 : i32
    %c0_i32_1 = arith.constant 0 : i32
    return %c0_i32, %c0_i32_0 : i32, i32
  }
  func.func @transform_4(%arg0: i32) -> (i32, i32) {
    %c0_i32 = arith.constant 0 : i32
    %c0_i32_0 = arith.constant 0 : i32
    %c0_i32_1 = arith.constant 0 : i32
    return %c0_i32, %c0_i32_0 : i32, i32
  }
  func.func @transform_5(%arg0: i32) -> (i32, i32) {
    %c0_i32 = arith.constant 0 : i32
    %c0_i32_0 = arith.constant 0 : i32
    return %arg0, %c0_i32 : i32, i32
  }
}

</mosaic_0001>

<llo_original>
// kernel: tpu_custom_call.1
$region0: #{tpu_custom_call.1}
  #allocation0 [shape = 'u32[]', space=smem, size = 0x4, offset = 0x4, fixed_abs, tag = 'smem constant byte address 0x4 - core index']
  #allocation1 [shape = 'u32[144,128]{1,0:T(1,128)}', space=vmem, size = 0x12000, scoped, tag = 'internal scratch']
  %s0 = inlined_call_operand.hbm [shape: f32[16,128], index: 0, kind: input, shape index: {}]
  %s1 = inlined_call_operand.hbm [shape: bf16[128,512], index: 1, kind: input, shape index: {}]
  %s2 = inlined_call_operand.hbm [shape: f32[1,512], index: 2, kind: input, shape index: {}]
  %s3 = inlined_call_operand.hbm [shape: bf16[512,128], index: 3, kind: input, shape index: {}]
  %s4 = inlined_call_operand.vmem [shape: f32[1,128], index: 4, kind: input, shape index: {}]
  %s5 = inlined_call_operand.hbm [shape: f32[16,128], index: 5, kind: output, shape index: {}]
  %s6 = sld [smem:[#allocation0]]
  $region46: #{tpu_custom_call.1} parent=0
    _
  %s8 = ssub.s32 1, %s6
  %s9 = scalar_select 0, %s8, %s6
  $region1: #{tpu_custom_call.1} parent=0
    #allocation2 [shape = 'u8[8192]{0}', space=vmem, size = 0x2000, scoped, tag = 'input window, operand 0, single buffered']
    #allocation3 [shape = 's32[1]{0}', space=sflag, size = 0x4, scoped, tag = 'scoped memory for tpu_custom_call.1']
    #allocation4 [shape = 's32[1]{0}', space=sflag, size = 0x4, scoped, tag = 'scoped memory for tpu_custom_call.1']
    #allocation5 [shape = 'u8[131072]{0}', space=vmem, size = 0x20000, scoped, tag = 'input window, operand 1, single buffered']
    #allocation6 [shape = 's32[1]{0}', space=sflag, size = 0x4, scoped, tag = 'scoped memory for tpu_custom_call.1']
    #allocation7 [shape = 'u8[2048]{0}', space=vmem, size = 0x800, scoped, tag = 'input window, operand 2, single buffered']
    #allocation8 [shape = 'u8[131072]{0}', space=vmem, size = 0x20000, scoped, tag = 'input window, operand 3, single buffered']
    #allocation9 [shape = 's32[1]{0}', space=sflag, size = 0x4, scoped, tag = 'scoped memory for tpu_custom_call.1']
    #allocation10 [shape = 'u8[8192]{0}', space=vmem, size = 0x2000, scoped, tag = 'output window, operand 0, single buffered']
    %10 = vsyncpa [#allocation3], 0
    %11 = vsyncpa [#allocation6], 0
    %12 = vsyncpa [#allocation9], 0
    %13 = vsyncpa [#allocation4], 0
    // Predicated region
    $region2: #{tpu_custom_call.1} parent=1 // pred_check
      _
    $region3: #{tpu_custom_call.1} parent=1 // pred_check_branch
      %15 = sbr.rel (0) target = $region5
    $region4: #{tpu_custom_call.1} parent=1 // pred_region
      %s17 = ssub.s32 256, 256
      %18 = vsyncadd [#allocation3], %s17
      %s19 = sshll.u32 [#allocation2], 4
      %s20 = int_to_ptr.vmem [resolvable:$true] %s19
      %25 = dma.hbm_to_vmem [thread:$0]  %s0, 256, %s20, [#allocation3], 128, 128, 8
    $region5: #{tpu_custom_call.1} parent=1 // pred_fallthru
      _
    // Predicated region
    $region6: #{tpu_custom_call.1} parent=1 // pred_check
      _
    $region7: #{tpu_custom_call.1} parent=1 // pred_check_branch
      %27 = sbr.rel (0) target = $region9
    $region8: #{tpu_custom_call.1} parent=1 // pred_region
      %s29 = ssub.s32 4096, 4096
      %30 = vsyncadd [#allocation6], %s29
      %s31 = sshll.u32 [#allocation5], 4
      %s32 = int_to_ptr.vmem [resolvable:$true] %s31
      %37 = dma.hbm_to_vmem [thread:$0]  %s1, 4096, %s32, [#allocation6], 256, 256, 16
    $region9: #{tpu_custom_call.1} parent=1 // pred_fallthru
      _
    // Predicated region
    $region10: #{tpu_custom_call.1} parent=1 // pred_check
      _
    $region11: #{tpu_custom_call.1} parent=1 // pred_check_branch
      %39 = sbr.rel (0) target = $region13
    $region12: #{tpu_custom_call.1} parent=1 // pred_region
      %s41 = ssub.s32 64, 64
      %42 = vsyncadd [#allocation6], %s41
      %s44 = sshll.u32 [#allocation7], 4
      %s45 = int_to_ptr.vmem [resolvable:$true] %s44
      %47 = dma.hbm_to_vmem [thread:$0]  %s2, 64, %s45, [#allocation6]
    $region13: #{tpu_custom_call.1} parent=1 // pred_fallthru
      _
    // Predicated region
    $region14: #{tpu_custom_call.1} parent=1 // pred_check
      _
    $region15: #{tpu_custom_call.1} parent=1 // pred_check_branch
      %49 = sbr.rel (0) target = $region17
    $region16: #{tpu_custom_call.1} parent=1 // pred_region
      %s51 = ssub.s32 4096, 4096
      %52 = vsyncadd [#allocation9], %s51
      %s53 = sshll.u32 [#allocation8], 4
      %s54 = int_to_ptr.vmem [resolvable:$true] %s53
      %59 = dma.hbm_to_vmem [thread:$0]  %s3, 4096, %s54, [#allocation9], 64, 64, 4
    $region17: #{tpu_custom_call.1} parent=1 // pred_fallthru
      _
    // Predicated region
    $region18: #{tpu_custom_call.1} parent=1 // pred_check
      _
    $region19: #{tpu_custom_call.1} parent=1 // pred_check_branch
      %61 = sbr.rel (0) target = $region21
    $region20: #{tpu_custom_call.1} parent=1 // pred_region
      _
    $region21: #{tpu_custom_call.1} parent=1 // pred_fallthru
      _
    // Predicated region
    $region22: #{tpu_custom_call.1} parent=1 // pred_check
      _
    $region23: #{tpu_custom_call.1} parent=1 // pred_check_branch
      %63 = sbr.rel (0) target = $region25
    $region24: #{tpu_custom_call.1} parent=1 // pred_region
      %64 = dma.done [#allocation3], 256
    $region25: #{tpu_custom_call.1} parent=1 // pred_fallthru
      _
    // Predicated region
    $region26: #{tpu_custom_call.1} parent=1 // pred_check
      _
    $region27: #{tpu_custom_call.1} parent=1 // pred_check_branch
      %66 = sbr.rel (0) target = $region29
    $region28: #{tpu_custom_call.1} parent=1 // pred_region
      %67 = dma.done [#allocation6], 4096
    $region29: #{tpu_custom_call.1} parent=1 // pred_fallthru
      _
    // Predicated region
    $region30: #{tpu_custom_call.1} parent=1 // pred_check
      _
    $region31: #{tpu_custom_call.1} parent=1 // pred_check_branch
      %69 = sbr.rel (0) target = $region33
    $region32: #{tpu_custom_call.1} parent=1 // pred_region
      %70 = dma.done [#allocation6], 64
    $region33: #{tpu_custom_call.1} parent=1 // pred_fallthru
      _
    // Predicated region
    $region34: #{tpu_custom_call.1} parent=1 // pred_check
      _
    $region35: #{tpu_custom_call.1} parent=1 // pred_check_branch
      %72 = sbr.rel (0) target = $region37
    $region36: #{tpu_custom_call.1} parent=1 // pred_region
      %73 = dma.done [#allocation9], 4096
    $region37: #{tpu_custom_call.1} parent=1 // pred_fallthru
      _
    %v75 = vld [vmem:[#allocation2] sm:$0xff]
    %v76 = vld [vmem:[#allocation2 + $0x8] sm:$0xff]
    %v77 = vpack.c.bf16 %v76, %v75
    %v78 = vld [vmem:[#allocation5] sm:$0xff]
    %v79 = vld [vmem:[#allocation5 + $0x8] sm:$0xff]
    %v80 = vld [vmem:[#allocation5 + $0x10] sm:$0xff]
    %v81 = vld [vmem:[#allocation5 + $0x18] sm:$0xff]
    %v82 = vld [vmem:[#allocation5 + $0x20] sm:$0xff]
    %v83 = vld [vmem:[#allocation5 + $0x28] sm:$0xff]
    %v84 = vld [vmem:[#allocation5 + $0x30] sm:$0xff]
    %v85 = vld [vmem:[#allocation5 + $0x38] sm:$0xff]
    %v86 = vld [vmem:[#allocation5 + $0x40] sm:$0xff]
    %v87 = vld [vmem:[#allocation5 + $0x48] sm:$0xff]
    %v88 = vld [vmem:[#allocation5 + $0x50] sm:$0xff]
    %v89 = vld [vmem:[#allocation5 + $0x58] sm:$0xff]
    %v90 = vld [vmem:[#allocation5 + $0x60] sm:$0xff]
    %v91 = vld [vmem:[#allocation5 + $0x68] sm:$0xff]
    %v92 = vld [vmem:[#allocation5 + $0x70] sm:$0xff]
    %v93 = vld [vmem:[#allocation5 + $0x78] sm:$0xff]
    %v94 = vld [vmem:[#allocation5 + $0x80] sm:$0xff]
    %v95 = vld [vmem:[#allocation5 + $0x88] sm:$0xff]
    %v96 = vld [vmem:[#allocation5 + $0x90] sm:$0xff]
    %v97 = vld [vmem:[#allocation5 + $0x98] sm:$0xff]
    %v98 = vld [vmem:[#allocation5 + $0xa0] sm:$0xff]
    %v99 = vld [vmem:[#allocation5 + $0xa8] sm:$0xff]
    %v100 = vld [vmem:[#allocation5 + $0xb0] sm:$0xff]
    %v101 = vld [vmem:[#allocation5 + $0xb8] sm:$0xff]
    %v102 = vld [vmem:[#allocation5 + $0xc0] sm:$0xff]
    %v103 = vld [vmem:[#allocation5 + $0xc8] sm:$0xff]
    %v104 = vld [vmem:[#allocation5 + $0xd0] sm:$0xff]
    %v105 = vld [vmem:[#allocation5 + $0xd8] sm:$0xff]
    %v106 = vld [vmem:[#allocation5 + $0xe0] sm:$0xff]
    %v107 = vld [vmem:[#allocation5 + $0xe8] sm:$0xff]
    %v108 = vld [vmem:[#allocation5 + $0xf0] sm:$0xff]
    %v109 = vld [vmem:[#allocation5 + $0xf8] sm:$0xff]
    %v110 = vld [vmem:[#allocation7] sm:$0xf]
    %v111 = vld [vmem:[#allocation8] sm:$0xf]
    %v112 = vld [vmem:[#allocation8 + $0x4] sm:$0xf]
    %v113 = vld [vmem:[#allocation8 + $0x8] sm:$0xf]
    %v114 = vld [vmem:[#allocation8 + $0xc] sm:$0xf]
    %v115 = vld [vmem:[#allocation8 + $0x10] sm:$0xf]
    %v116 = vld [vmem:[#allocation8 + $0x14] sm:$0xf]
    %v117 = vld [vmem:[#allocation8 + $0x18] sm:$0xf]
    %v118 = vld [vmem:[#allocation8 + $0x1c] sm:$0xf]
    %v119 = vld [vmem:[#allocation8 + $0x20] sm:$0xf]
    %v120 = vld [vmem:[#allocation8 + $0x24] sm:$0xf]
    %v121 = vld [vmem:[#allocation8 + $0x28] sm:$0xf]
    %v122 = vld [vmem:[#allocation8 + $0x2c] sm:$0xf]
    %v123 = vld [vmem:[#allocation8 + $0x30] sm:$0xf]
    %v124 = vld [vmem:[#allocation8 + $0x34] sm:$0xf]
    %v125 = vld [vmem:[#allocation8 + $0x38] sm:$0xf]
    %v126 = vld [vmem:[#allocation8 + $0x3c] sm:$0xf]
    %v127 = vld [vmem:[#allocation8 + $0x40] sm:$0xf]
    %v128 = vld [vmem:[#allocation8 + $0x44] sm:$0xf]
    %v129 = vld [vmem:[#allocation8 + $0x48] sm:$0xf]
    %v130 = vld [vmem:[#allocation8 + $0x4c] sm:$0xf]
    %v131 = vld [vmem:[#allocation8 + $0x50] sm:$0xf]
    %v132 = vld [vmem:[#allocation8 + $0x54] sm:$0xf]
    %v133 = vld [vmem:[#allocation8 + $0x58] sm:$0xf]
    %v134 = vld [vmem:[#allocation8 + $0x5c] sm:$0xf]
    %v135 = vld [vmem:[#allocation8 + $0x60] sm:$0xf]
    %v136 = vld [vmem:[#allocation8 + $0x64] sm:$0xf]
    %v137 = vld [vmem:[#allocation8 + $0x68] sm:$0xf]
    %v138 = vld [vmem:[#allocation8 + $0x6c] sm:$0xf]
    %v139 = vld [vmem:[#allocation8 + $0x70] sm:$0xf]
    %v140 = vld [vmem:[#allocation8 + $0x74] sm:$0xf]
    %v141 = vld [vmem:[#allocation8 + $0x78] sm:$0xf]
    %v142 = vld [vmem:[#allocation8 + $0x7c] sm:$0xf]
    %v143 = vld [vmem:[#allocation8 + $0x80] sm:$0xf]
    %v144 = vld [vmem:[#allocation8 + $0x84] sm:$0xf]
    %v145 = vld [vmem:[#allocation8 + $0x88] sm:$0xf]
    %v146 = vld [vmem:[#allocation8 + $0x8c] sm:$0xf]
    %v147 = vld [vmem:[#allocation8 + $0x90] sm:$0xf]
    %v148 = vld [vmem:[#allocation8 + $0x94] sm:$0xf]
    %v149 = vld [vmem:[#allocation8 + $0x98] sm:$0xf]
    %v150 = vld [vmem:[#allocation8 + $0x9c] sm:$0xf]
    %v151 = vld [vmem:[#allocation8 + $0xa0] sm:$0xf]
    %v152 = vld [vmem:[#allocation8 + $0xa4] sm:$0xf]
    %v153 = vld [vmem:[#allocation8 + $0xa8] sm:$0xf]
    %v154 = vld [vmem:[#allocation8 + $0xac] sm:$0xf]
    %v155 = vld [vmem:[#allocation8 + $0xb0] sm:$0xf]
    %v156 = vld [vmem:[#allocation8 + $0xb4] sm:$0xf]
    %v157 = vld [vmem:[#allocation8 + $0xb8] sm:$0xf]
    %v158 = vld [vmem:[#allocation8 + $0xbc] sm:$0xf]
    %v159 = vld [vmem:[#allocation8 + $0xc0] sm:$0xf]
    %v160 = vld [vmem:[#allocation8 + $0xc4] sm:$0xf]
    %v161 = vld [vmem:[#allocation8 + $0xc8] sm:$0xf]
    %v162 = vld [vmem:[#allocation8 + $0xcc] sm:$0xf]
    %v163 = vld [vmem:[#allocation8 + $0xd0] sm:$0xf]
    %v164 = vld [vmem:[#allocation8 + $0xd4] sm:$0xf]
    %v165 = vld [vmem:[#allocation8 + $0xd8] sm:$0xf]
    %v166 = vld [vmem:[#allocation8 + $0xdc] sm:$0xf]
    %v167 = vld [vmem:[#allocation8 + $0xe0] sm:$0xf]
    %v168 = vld [vmem:[#allocation8 + $0xe4] sm:$0xf]
    %v169 = vld [vmem:[#allocation8 + $0xe8] sm:$0xf]
    %v170 = vld [vmem:[#allocation8 + $0xec] sm:$0xf]
    %v171 = vld [vmem:[#allocation8 + $0xf0] sm:$0xf]
    %v172 = vld [vmem:[#allocation8 + $0xf4] sm:$0xf]
    %v173 = vld [vmem:[#allocation8 + $0xf8] sm:$0xf]
    %v174 = vld [vmem:[#allocation8 + $0xfc] sm:$0xf]
    %v176 = vlaneseq
    %v177 = vshrl.u32 %v176, 7
    %v178 = vsub.s32 0, %v177
    %v179 = vrot.slane %v110, %v178
    %v180 = vlaneseq
    %v181 = vshrl.u32 %v180, 7
    %v182 = vsub.s32 1, %v181
    %v183 = vrot.slane %v110, %v182
    %v184 = vlaneseq
    %v185 = vshrl.u32 %v184, 7
    %v186 = vsub.s32 2, %v185
    %v187 = vrot.slane %v110, %v186
    %v188 = vlaneseq
    %v189 = vshrl.u32 %v188, 7
    %v190 = vsub.s32 3, %v189
    %v191 = vrot.slane %v110, %v190
    %v228 = vunpack.c.l.b16 %v78
    %v229 = vunpack.c.h.b16 %v78
    %v230 = vunpack.c.l.b16 %v79
    %v231 = vunpack.c.h.b16 %v79
    %v232 = vunpack.c.l.b16 %v80
    %v233 = vunpack.c.h.b16 %v80
    %v234 = vunpack.c.l.b16 %v81
    %v235 = vunpack.c.h.b16 %v81
    %v236 = vunpack.c.l.b16 %v82
    %v237 = vunpack.c.h.b16 %v82
    %v238 = vunpack.c.l.b16 %v83
    %v239 = vunpack.c.h.b16 %v83
    %v240 = vunpack.c.l.b16 %v84
    %v241 = vunpack.c.h.b16 %v84
    %v242 = vunpack.c.l.b16 %v85
    %v243 = vunpack.c.h.b16 %v85
    %v244 = vunpack.c.l.b16 %v86
    %v245 = vunpack.c.h.b16 %v86
    %v246 = vunpack.c.l.b16 %v87
    %v247 = vunpack.c.h.b16 %v87
    %v248 = vunpack.c.l.b16 %v88
    %v249 = vunpack.c.h.b16 %v88
    %v250 = vunpack.c.l.b16 %v89
    %v251 = vunpack.c.h.b16 %v89
    %v252 = vunpack.c.l.b16 %v90
    %v253 = vunpack.c.h.b16 %v90
    %v254 = vunpack.c.l.b16 %v91
    %v255 = vunpack.c.h.b16 %v91
    %v256 = vunpack.c.l.b16 %v92
    %v257 = vunpack.c.h.b16 %v92
    %v258 = vunpack.c.l.b16 %v93
    %v259 = vunpack.c.h.b16 %v93
    %v260 = vunpack.c.l.b16 %v94
    %v261 = vunpack.c.h.b16 %v94
    %v262 = vunpack.c.l.b16 %v95
    %v263 = vunpack.c.h.b16 %v95
    %v264 = vunpack.c.l.b16 %v96
    %v265 = vunpack.c.h.b16 %v96
    %v266 = vunpack.c.l.b16 %v97
    %v267 = vunpack.c.h.b16 %v97
    %v268 = vunpack.c.l.b16 %v98
    %v269 = vunpack.c.h.b16 %v98
    %v270 = vunpack.c.l.b16 %v99
    %v271 = vunpack.c.h.b16 %v99
    %v272 = vunpack.c.l.b16 %v100
    %v273 = vunpack.c.h.b16 %v100
    %v274 = vunpack.c.l.b16 %v101
    %v275 = vunpack.c.h.b16 %v101
    %v276 = vunpack.c.l.b16 %v102
    %v277 = vunpack.c.h.b16 %v102
    %v278 = vunpack.c.l.b16 %v103
    %v279 = vunpack.c.h.b16 %v103
    %v280 = vunpack.c.l.b16 %v104
    %v281 = vunpack.c.h.b16 %v104
    %v282 = vunpack.c.l.b16 %v105
    %v283 = vunpack.c.h.b16 %v105
    %v284 = vunpack.c.l.b16 %v106
    %v285 = vunpack.c.h.b16 %v106
    %v286 = vunpack.c.l.b16 %v107
    %v287 = vunpack.c.h.b16 %v107
    %v288 = vunpack.c.l.b16 %v108
    %v289 = vunpack.c.h.b16 %v108
    %v290 = vunpack.c.l.b16 %v109
    %v291 = vunpack.c.h.b16 %v109
    %v292 = vpack.c.b16 %v232, %v228
    %v293 = vpack.c.b16 %v233, %v229
    %v294 = vpack.c.b16 %v234, %v230
    %v295 = vpack.c.b16 %v235, %v231
    %v296 = vpack.c.b16 %v240, %v236
    %v297 = vpack.c.b16 %v241, %v237
    %v298 = vpack.c.b16 %v242, %v238
    %v299 = vpack.c.b16 %v243, %v239
    %v300 = vpack.c.b16 %v248, %v244
    %v301 = vpack.c.b16 %v249, %v245
    %v302 = vpack.c.b16 %v250, %v246
    %v303 = vpack.c.b16 %v251, %v247
    %v304 = vpack.c.b16 %v256, %v252
    %v305 = vpack.c.b16 %v257, %v253
    %v306 = vpack.c.b16 %v258, %v254
    %v307 = vpack.c.b16 %v259, %v255
    %v308 = vpack.c.b16 %v264, %v260
    %v309 = vpack.c.b16 %v265, %v261
    %v310 = vpack.c.b16 %v266, %v262
    %v311 = vpack.c.b16 %v267, %v263
    %v312 = vpack.c.b16 %v272, %v268
    %v313 = vpack.c.b16 %v273, %v269
    %v314 = vpack.c.b16 %v274, %v270
    %v315 = vpack.c.b16 %v275, %v271
    %v316 = vpack.c.b16 %v280, %v276
    %v317 = vpack.c.b16 %v281, %v277
    %v318 = vpack.c.b16 %v282, %v278
    %v319 = vpack.c.b16 %v283, %v279
    %v320 = vpack.c.b16 %v288, %v284
    %v321 = vpack.c.b16 %v289, %v285
    %v322 = vpack.c.b16 %v290, %v286
    %v323 = vpack.c.b16 %v291, %v287
    %356 = vmatprep.subr.bf16.mxu0 %v321
    %357 = vmatpush1.bf16.msra.mxu0 %v320
    %358 = vmatprep.subr.bf16.mxu0 %v317
    %359 = vmatpush1.bf16.msra.mxu0 %v316
    %360 = vmatprep.subr.bf16.mxu0 %v313
    %361 = vmatpush1.bf16.msra.mxu0 %v312
    %362 = vmatprep.subr.bf16.mxu0 %v309
    %363 = vmatpush1.bf16.msra.mxu0 %v308
    %364 = vmatprep.subr.bf16.mxu0 %v305
    %365 = vmatpush1.bf16.msra.mxu0 %v304
    %366 = vmatprep.subr.bf16.mxu0 %v301
    %367 = vmatpush1.bf16.msra.mxu0 %v300
    %368 = vmatprep.subr.bf16.mxu0 %v297
    %369 = vmatpush1.bf16.msra.mxu0 %v296
    %370 = vmatprep.subr.bf16.mxu0 %v293
    %371 = vmatpush1.bf16.msra.mxu0 %v292
    %372 = vmatprep.subr.bf16.mxu0 0
    %373 = vmatpush2.bf16.msra.mxu0 0
    %374 = vmatprep.subr.bf16.mxu0 0
    %375 = vmatpush2.bf16.msra.mxu0 0
    %376 = vmatprep.subr.bf16.mxu0 0
    %377 = vmatpush2.bf16.msra.mxu0 0
    %378 = vmatprep.subr.bf16.mxu0 0
    %379 = vmatpush2.bf16.msra.mxu0 0
    %380 = vmatprep.subr.bf16.mxu0 0
    %381 = vmatpush2.bf16.msra.mxu0 0
    %382 = vmatprep.subr.bf16.mxu0 0
    %383 = vmatpush2.bf16.msra.mxu0 0
    %384 = vmatprep.subr.bf16.mxu0 0
    %385 = vmatpush2.bf16.msra.mxu0 0
    %386 = vmatprep.subr.bf16.mxu0 0
    %387 = vmatpush2.bf16.msra.mxu0 0
    %388 = vmatprep.mubr.bf16.mxu0 0
    %389 = vmatmul.mubr.bf16.gmra.mxu0 %v77
    %v390 = vpop.f32.mrf.mxu0
    %v391 = vadd.f32 %v179, %v390
    %v392 = vpop.f32.mrf.mxu0
    %v393 = vadd.f32 %v183, %v392
    %v394 = vpop.f32.mrf.mxu0
    %v395 = vadd.f32 %v179, %v394
    %v396 = vpop.f32.mrf.mxu0
    %v397 = vadd.f32 %v183, %v396
    %398 = vdwg.mxu0
    %399 = vmatprep.subr.bf16.mxu0 %v323
    %400 = vmatpush1.bf16.msra.mxu0 %v322
    %401 = vmatprep.subr.bf16.mxu0 %v319
    %402 = vmatpush1.bf16.msra.mxu0 %v318
    %403 = vmatprep.subr.bf16.mxu0 %v315
    %404 = vmatpush1.bf16.msra.mxu0 %v314
    %405 = vmatprep.subr.bf16.mxu0 %v311
    %406 = vmatpush1.bf16.msra.mxu0 %v310
    %407 = vmatprep.subr.bf16.mxu0 %v307
    %408 = vmatpush1.bf16.msra.mxu0 %v306
    %409 = vmatprep.subr.bf16.mxu0 %v303
    %410 = vmatpush1.bf16.msra.mxu0 %v302
    %411 = vmatprep.subr.bf16.mxu0 %v299
    %412 = vmatpush1.bf16.msra.mxu0 %v298
    %413 = vmatprep.subr.bf16.mxu0 %v295
    %414 = vmatpush1.bf16.msra.mxu0 %v294
    %415 = vmatprep.subr.bf16.mxu0 0
    %416 = vmatpush2.bf16.msra.mxu0 0
    %417 = vmatprep.subr.bf16.mxu0 0
    %418 = vmatpush2.bf16.msra.mxu0 0
    %419 = vmatprep.subr.bf16.mxu0 0
    %420 = vmatpush2.bf16.msra.mxu0 0
    %421 = vmatprep.subr.bf16.mxu0 0
    %422 = vmatpush2.bf16.msra.mxu0 0
    %423 = vmatprep.subr.bf16.mxu0 0
    %424 = vmatpush2.bf16.msra.mxu0 0
    %425 = vmatprep.subr.bf16.mxu0 0
    %426 = vmatpush2.bf16.msra.mxu0 0
    %427 = vmatprep.subr.bf16.mxu0 0
    %428 = vmatpush2.bf16.msra.mxu0 0
    %429 = vmatprep.subr.bf16.mxu0 0
    %430 = vmatpush2.bf16.msra.mxu0 0
    %431 = vmatprep.mubr.bf16.mxu0 0
    %432 = vmatmul.mubr.bf16.gmra.mxu0 %v77
    %v433 = vpop.f32.mrf.mxu0
    %v434 = vadd.f32 %v187, %v433
    %v435 = vpop.f32.mrf.mxu0
    %v436 = vadd.f32 %v191, %v435
    %v437 = vpop.f32.mrf.mxu0
    %v438 = vadd.f32 %v187, %v437
    %v439 = vpop.f32.mrf.mxu0
    %v440 = vadd.f32 %v191, %v439
    %441 = vdwg.mxu0
    %v442 = vmul.f32 %v391, 0.5
    %v443 = vmul.f32 %v393, 0.5
    %v444 = vmul.f32 %v434, 0.5
    %v445 = vmul.f32 %v436, 0.5
    %v446 = vmul.f32 %v395, 0.5
    %v447 = vmul.f32 %v397, 0.5
    %v448 = vmul.f32 %v438, 0.5
    %v449 = vmul.f32 %v440, 0.5
    %v450 = vmul.f32 %v391, 0.70710677
    %v451 = vmul.f32 %v393, 0.70710677
    %v452 = vmul.f32 %v434, 0.70710677
    %v453 = vmul.f32 %v436, 0.70710677
    %v454 = vmul.f32 %v395, 0.70710677
    %v455 = vmul.f32 %v397, 0.70710677
    %v456 = vmul.f32 %v438, 0.70710677
    %v457 = vmul.f32 %v440, 0.70710677
    %v458 = verf.f32.pop %v450
    %v459 = verf.f32.pop %v451
    %v460 = verf.f32.pop %v452
    %v461 = verf.f32.pop %v453
    %v462 = verf.f32.pop %v454
    %v463 = verf.f32.pop %v455
    %v464 = verf.f32.pop %v456
    %v465 = verf.f32.pop %v457
    %v466 = vadd.f32 %v458, 1.0
    %v467 = vadd.f32 %v459, 1.0
    %v468 = vadd.f32 %v460, 1.0
    %v469 = vadd.f32 %v461, 1.0
    %v470 = vadd.f32 %v462, 1.0
    %v471 = vadd.f32 %v463, 1.0
    %v472 = vadd.f32 %v464, 1.0
    %v473 = vadd.f32 %v465, 1.0
    %v474 = vmul.f32 %v442, %v466
    %v475 = vmul.f32 %v443, %v467
    %v476 = vmul.f32 %v444, %v468
    %v477 = vmul.f32 %v445, %v469
    %v478 = vmul.f32 %v446, %v470
    %v479 = vmul.f32 %v447, %v471
    %v480 = vmul.f32 %v448, %v472
    %v481 = vmul.f32 %v449, %v473
    %v482 = vpack.c.bf16 %v478, %v474
    %v483 = vpack.c.bf16 %v479, %v475
    %v484 = vpack.c.bf16 %v480, %v476
    %v485 = vpack.c.bf16 %v481, %v477
    %v486 = vld [vmem:[%s4] sm:$0x1]
    %v488 = vlaneseq
    %v489 = vshrl.u32 %v488, 7
    %v490 = vsub.s32 0, %v489
    %v491 = vrot.slane %v486, %v490
    %v557 = vunpack.c.l.b16 %v111
    %v558 = vunpack.c.l.b16 %v112
    %v559 = vunpack.c.l.b16 %v113
    %v560 = vunpack.c.l.b16 %v114
    %v561 = vunpack.c.l.b16 %v115
    %v562 = vunpack.c.l.b16 %v116
    %v563 = vunpack.c.l.b16 %v117
    %v564 = vunpack.c.l.b16 %v118
    %v565 = vunpack.c.l.b16 %v119
    %v566 = vunpack.c.l.b16 %v120
    %v567 = vunpack.c.l.b16 %v121
    %v568 = vunpack.c.l.b16 %v122
    %v569 = vunpack.c.l.b16 %v123
    %v570 = vunpack.c.l.b16 %v124
    %v571 = vunpack.c.l.b16 %v125
    %v572 = vunpack.c.l.b16 %v126
    %v573 = vunpack.c.l.b16 %v127
    %v574 = vunpack.c.l.b16 %v128
    %v575 = vunpack.c.l.b16 %v129
    %v576 = vunpack.c.l.b16 %v130
    %v577 = vunpack.c.l.b16 %v131
    %v578 = vunpack.c.l.b16 %v132
    %v579 = vunpack.c.l.b16 %v133
    %v580 = vunpack.c.l.b16 %v134
    %v581 = vunpack.c.l.b16 %v135
    %v582 = vunpack.c.l.b16 %v136
    %v583 = vunpack.c.l.b16 %v137
    %v584 = vunpack.c.l.b16 %v138
    %v585 = vunpack.c.l.b16 %v139
    %v586 = vunpack.c.l.b16 %v140
    %v587 = vunpack.c.l.b16 %v141
    %v588 = vunpack.c.l.b16 %v142
    %v589 = vunpack.c.l.b16 %v143
    %v590 = vunpack.c.l.b16 %v144
    %v591 = vunpack.c.l.b16 %v145
    %v592 = vunpack.c.l.b16 %v146
    %v593 = vunpack.c.l.b16 %v147
    %v594 = vunpack.c.l.b16 %v148
    %v595 = vunpack.c.l.b16 %v149
    %v596 = vunpack.c.l.b16 %v150
    %v597 = vunpack.c.l.b16 %v151
    %v598 = vunpack.c.l.b16 %v152
    %v599 = vunpack.c.l.b16 %v153
    %v600 = vunpack.c.l.b16 %v154
    %v601 = vunpack.c.l.b16 %v155
    %v602 = vunpack.c.l.b16 %v156
    %v603 = vunpack.c.l.b16 %v157
    %v604 = vunpack.c.l.b16 %v158
    %v605 = vunpack.c.l.b16 %v159
    %v606 = vunpack.c.l.b16 %v160
    %v607 = vunpack.c.l.b16 %v161
    %v608 = vunpack.c.l.b16 %v162
    %v609 = vunpack.c.l.b16 %v163
    %v610 = vunpack.c.l.b16 %v164
    %v611 = vunpack.c.l.b16 %v165
    %v612 = vunpack.c.l.b16 %v166
    %v613 = vunpack.c.l.b16 %v167
    %v614 = vunpack.c.l.b16 %v168
    %v615 = vunpack.c.l.b16 %v169
    %v616 = vunpack.c.l.b16 %v170
    %v617 = vunpack.c.l.b16 %v171
    %v618 = vunpack.c.l.b16 %v172
    %v619 = vunpack.c.l.b16 %v173
    %v620 = vunpack.c.l.b16 %v174
    %v621 = vpack.c.b16 %v558, %v557
    %v622 = vpack.c.b16 %v560, %v559
    %v623 = vpack.c.b16 %v562, %v561
    %v624 = vpack.c.b16 %v564, %v563
    %v625 = vpack.c.b16 %v566, %v565
    %v626 = vpack.c.b16 %v568, %v567
    %v627 = vpack.c.b16 %v570, %v569
    %v628 = vpack.c.b16 %v572, %v571
    %v629 = vpack.c.b16 %v574, %v573
    %v630 = vpack.c.b16 %v576, %v575
    %v631 = vpack.c.b16 %v578, %v577
    %v632 = vpack.c.b16 %v580, %v579
    %v633 = vpack.c.b16 %v582, %v581
    %v634 = vpack.c.b16 %v584, %v583
    %v635 = vpack.c.b16 %v586, %v585
    %v636 = vpack.c.b16 %v588, %v587
    %v637 = vpack.c.b16 %v590, %v589
    %v638 = vpack.c.b16 %v592, %v591
    %v639 = vpack.c.b16 %v594, %v593
    %v640 = vpack.c.b16 %v596, %v595
    %v641 = vpack.c.b16 %v598, %v597
    %v642 = vpack.c.b16 %v600, %v599
    %v643 = vpack.c.b16 %v602, %v601
    %v644 = vpack.c.b16 %v604, %v603
    %v645 = vpack.c.b16 %v606, %v605
    %v646 = vpack.c.b16 %v608, %v607
    %v647 = vpack.c.b16 %v610, %v609
    %v648 = vpack.c.b16 %v612, %v611
    %v649 = vpack.c.b16 %v614, %v613
    %v650 = vpack.c.b16 %v616, %v615
    %v651 = vpack.c.b16 %v618, %v617
    %v652 = vpack.c.b16 %v620, %v619
    %685 = vmatprep.subr.bf16.mxu0 0
    %686 = vmatpush1.bf16.msra.mxu0 %v628
    %687 = vmatprep.subr.bf16.mxu0 0
    %688 = vmatpush1.bf16.msra.mxu0 %v627
    %689 = vmatprep.subr.bf16.mxu0 0
    %690 = vmatpush1.bf16.msra.mxu0 %v626
    %691 = vmatprep.subr.bf16.mxu0 0
    %692 = vmatpush1.bf16.msra.mxu0 %v625
    %693 = vmatprep.subr.bf16.mxu0 0
    %694 = vmatpush1.bf16.msra.mxu0 %v624
    %695 = vmatprep.subr.bf16.mxu0 0
    %696 = vmatpush1.bf16.msra.mxu0 %v623
    %697 = vmatprep.subr.bf16.mxu0 0
    %698 = vmatpush1.bf16.msra.mxu0 %v622
    %699 = vmatprep.subr.bf16.mxu0 0
    %700 = vmatpush1.bf16.msra.mxu0 %v621
    %701 = vmatprep.subr.bf16.mxu0 0
    %702 = vmatpush2.bf16.msra.mxu0 %v636
    %703 = vmatprep.subr.bf16.mxu0 0
    %704 = vmatpush2.bf16.msra.mxu0 %v635
    %705 = vmatprep.subr.bf16.mxu0 0
    %706 = vmatpush2.bf16.msra.mxu0 %v634
    %707 = vmatprep.subr.bf16.mxu0 0
    %708 = vmatpush2.bf16.msra.mxu0 %v633
    %709 = vmatprep.subr.bf16.mxu0 0
    %710 = vmatpush2.bf16.msra.mxu0 %v632
    %711 = vmatprep.subr.bf16.mxu0 0
    %712 = vmatpush2.bf16.msra.mxu0 %v631
    %713 = vmatprep.subr.bf16.mxu0 0
    %714 = vmatpush2.bf16.msra.mxu0 %v630
    %715 = vmatprep.subr.bf16.mxu0 0
    %716 = vmatpush2.bf16.msra.mxu0 %v629
    %717 = vmatprep.mubr.bf16.mxu0 %v483
    %718 = vmatmul.mubr.bf16.gmra.mxu0 %v482
    %v719 = vpop.f32.mrf.mxu0
    %v720 = vadd.f32 %v491, %v719
    %v721 = vpop.f32.mrf.mxu0
    %v722 = vpop.f32.mrf.mxu0
    %v723 = vadd.f32 %v491, %v722
    %v724 = vpop.f32.mrf.mxu0
    %725 = vdwg.mxu0
    %726 = vmatprep.subr.bf16.mxu0 0
    %727 = vmatpush1.bf16.msra.mxu0 %v644
    %728 = vmatprep.subr.bf16.mxu0 0
    %729 = vmatpush1.bf16.msra.mxu0 %v643
    %730 = vmatprep.subr.bf16.mxu0 0
    %731 = vmatpush1.bf16.msra.mxu0 %v642
    %732 = vmatprep.subr.bf16.mxu0 0
    %733 = vmatpush1.bf16.msra.mxu0 %v641
    %734 = vmatprep.subr.bf16.mxu0 0
    %735 = vmatpush1.bf16.msra.mxu0 %v640
    %736 = vmatprep.subr.bf16.mxu0 0
    %737 = vmatpush1.bf16.msra.mxu0 %v639
    %738 = vmatprep.subr.bf16.mxu0 0
    %739 = vmatpush1.bf16.msra.mxu0 %v638
    %740 = vmatprep.subr.bf16.mxu0 0
    %741 = vmatpush1.bf16.msra.mxu0 %v637
    %742 = vmatprep.subr.bf16.mxu0 0
    %743 = vmatpush2.bf16.msra.mxu0 %v652
    %744 = vmatprep.subr.bf16.mxu0 0
    %745 = vmatpush2.bf16.msra.mxu0 %v651
    %746 = vmatprep.subr.bf16.mxu0 0
    %747 = vmatpush2.bf16.msra.mxu0 %v650
    %748 = vmatprep.subr.bf16.mxu0 0
    %749 = vmatpush2.bf16.msra.mxu0 %v649
    %750 = vmatprep.subr.bf16.mxu0 0
    %751 = vmatpush2.bf16.msra.mxu0 %v648
    %752 = vmatprep.subr.bf16.mxu0 0
    %753 = vmatpush2.bf16.msra.mxu0 %v647
    %754 = vmatprep.subr.bf16.mxu0 0
    %755 = vmatpush2.bf16.msra.mxu0 %v646
    %756 = vmatprep.subr.bf16.mxu0 0
    %757 = vmatpush2.bf16.msra.mxu0 %v645
    %758 = vmatprep.mubr.bf16.mxu0 %v485
    %759 = vmatmul.mubr.bf16.gmra.mxu0 %v484
    %v760 = vpop.f32.mrf.mxu0
    %v761 = vadd.f32 %v720, %v760
    %v762 = vpop.f32.mrf.mxu0
    %v763 = vpop.f32.mrf.mxu0
    %v764 = vadd.f32 %v723, %v763
    %v765 = vpop.f32.mrf.mxu0
    %766 = vdwg.mxu0
    %v767 = vadd.f32 %v761, %v75
    %v768 = vadd.f32 %v764, %v76
    %769 = vst [vmem:[#allocation10] sm:$0xff] %v767
    %770 = vst [vmem:[#allocation10 + $0x8] sm:$0xff] %v768
    // Predicated region
    $region38: #{tpu_custom_call.1} parent=1 // pred_check
      _
    $region39: #{tpu_custom_call.1} parent=1 // pred_check_branch
      %772 = sbr.rel (0) target = $region41
    $region40: #{tpu_custom_call.1} parent=1 // pred_region
      %s774 = ssub.s32 256, 256
      %775 = vsyncadd [#allocation4], %s774
      %s776 = sshll.u32 [#allocation10], 4
      %s777 = int_to_ptr.vmem [resolvable:$true] %s776
      %782 = dma.vmem_to_hbm [thread:$0]  %s777, 256, %s5, [#allocation4], 128, 128, 8
    $region41: #{tpu_custom_call.1} parent=1 // pred_fallthru
      _
    // Predicated region
    $region42: #{tpu_custom_call.1} parent=1 // pred_check
      _
    $region43: #{tpu_custom_call.1} parent=1 // pred_check_branch
      %784 = sbr.rel (0) target = $region45
    $region44: #{tpu_custom_call.1} parent=1 // pred_region
      %785 = dma.done [#allocation4], 256
    $region45: #{tpu_custom_call.1} parent=1 // pred_fallthru
      _
    %786 = vsyncpa [#allocation3], 1
    %787 = vsyncpa [#allocation6], 1
    %788 = vsyncpa [#allocation9], 1
    %789 = vsyncpa [#allocation4], 1

</llo_original>
